<compile_context>
chip_gen: v7x
topology: tpu7x:2x2x1
jax: 0.10.0
libtpu: 0.0.40
codegen_flags: <defaults>
</compile_context>

<pallas_src>
import math
import functools
import itertools

import numpy as np
import jax
import jax.numpy as jnp
from jax.experimental import pallas as pl
from jax.experimental.pallas import tpu as pltpu


# ----------------------------------------------------------------------------
# Pallas kernel: builds the transposed cost matrix C^T of shape (B, T, Qpad)
# ----------------------------------------------------------------------------
def _make_cost_kernel(cost_class: float, cost_coord: float, cost_bbox: float,
                      num_classes: int, num_targets: int):
    T = num_targets
    C = num_classes

    def cost_kernel(logits_ref, coords_ref, tgt_ref, c_ref):
        b = pl.program_id(0)

        logits = logits_ref[0].astype(jnp.float32)   # (C, TQ): class on sublanes, Q on lanes
        coords = coords_ref[0].astype(jnp.float32)   # (6, TQ)

        # ---- p1 = softmax(logits)[class=1], unrolled over the C sublane rows
        # (stable max-subtracted form; C is small and static).
        m = logits[0:1, :]
        for c in range(1, C):
            m = jnp.maximum(m, logits[c:c + 1, :])
        denom = None
        e1 = None
        for c in range(C):
            e = jnp.exp(logits[c:c + 1, :] - m)
            denom = e if denom is None else denom + e
            if c == 1:
                e1 = e
        p1 = e1 * pl.reciprocal(denom, approx=False)          # (1, TQ)

        # ---- spherical -> cartesian  (cos(th+pi/2) = -sin th, sin(th+pi/2) = cos th)
        r = coords[0:1, :]
        th = coords[1:2, :]
        ph = coords[2:3, :]
        sin_th = jnp.sin(th)
        cos_th = jnp.cos(th)
        sin_ph = jnp.sin(ph)
        cos_ph = jnp.cos(ph)
        d1 = -r * sin_th * cos_ph
        d3 = r * cos_th * cos_ph
        d2 = r * sin_ph

        # ---- per-sample scalar targets, read from SMEM
        # tgt row layout: [labels(0:T), kpt(T:T+3), bbox(T+3:T+6)]
        kx = tgt_ref[b, T + 0]
        ky = tgt_ref[b, T + 1]
        kz = tgt_ref[b, T + 2]
        bx = tgt_ref[b, T + 3]
        by = tgt_ref[b, T + 4]
        bz = tgt_ref[b, T + 5]

        cost_kpt = jnp.sqrt((d1 - kx) ** 2 + (d2 - ky) ** 2 + (d3 - kz) ** 2)   # (1, TQ)
        cost_boundary = jnp.sqrt((coords[3:4, :] - bx) ** 2 +
                                 (coords[4:5, :] - by) ** 2 +
                                 (coords[5:6, :] - bz) ** 2)                     # (1, TQ)

        base = cost_coord * cost_kpt + cost_bbox * cost_boundary                 # (1, TQ)

        # ---- one lane-dense row per target: C^T[b, t, :] = base + w*|p1 - label_t|
        rows = [base + cost_class * jnp.abs(p1 - tgt_ref[b, t]) for t in range(T)]
        c_ref[...] = jnp.concatenate(rows, axis=0)[None].astype(c_ref.dtype)     # (1, T, TQ)

    return cost_kernel


# ----------------------------------------------------------------------------
# Wrapper: layout plumbing + pallas_call with a (B, Q-tile) parallel grid
# ----------------------------------------------------------------------------
@functools.partial(
    jax.jit,
    static_argnames=("cost_class", "cost_coord", "cost_bbox", "tile_q"))
def hungarian_cost_matrix(pred_logits, pred_coords, tgt_labels, tgt_kpt,
                          tgt_bbox, *, cost_class=1.0, cost_coord=1.0,
                          cost_bbox=1.0, tile_q=512):
    """Returns the matching cost matrix C with shape (B, Q, T)."""
    if pred_coords.ndim == 2:                  # mirrors the PyTorch unsqueeze(1)
        pred_coords = pred_coords[:, None, :]
    B, Q, num_classes = pred_logits.shape
    T = tgt_labels.shape[1]
    assert num_classes >= 2, "softmax prob of class index 1 needs >= 2 classes"

    # Adaptive Q tiling: whole (128-padded) range for small Q, wide tiles for
    # large Q to amortise per-grid-step overhead.
    q_128 = pl.cdiv(Q, 128) * 128
    if q_128 <= tile_q:
        tile_eff, q_pad = q_128, q_128
    else:
        tile_eff = tile_q
        q_pad = pl.cdiv(Q, tile_q) * tile_q

    # Feature-major so Q sits on the lane axis; pad Q so tiles are lane-dense.
    logits_t = jnp.transpose(pred_logits.astype(jnp.float32), (0, 2, 1))   # (B, C, Q)
    coords_t = jnp.transpose(pred_coords.astype(jnp.float32), (0, 2, 1))   # (B, 6, Q)
    if q_pad != Q:
        logits_t = jnp.pad(logits_t, ((0, 0), (0, 0), (0, q_pad - Q)))
        coords_t = jnp.pad(coords_t, ((0, 0), (0, 0), (0, q_pad - Q)))

    # Coalesce the tiny target operands into one (B, T+6) f32 array (SMEM).
    tgt = jnp.concatenate(
        [tgt_labels.astype(jnp.float32),
         tgt_kpt.astype(jnp.float32),
         tgt_bbox.astype(jnp.float32)], axis=1)                            # (B, T+6)

    kernel = _make_cost_kernel(cost_class, cost_coord, cost_bbox,
                               num_classes, T)

    c_t = pl.pallas_call(
        kernel,
        out_shape=jax.ShapeDtypeStruct((B, T, q_pad), jnp.float32),
        grid_spec=pltpu.PrefetchScalarGridSpec(
            num_scalar_prefetch=0,
            grid=(B, q_pad // tile_eff),
            in_specs=[
                pl.BlockSpec((1, num_classes, tile_eff), lambda b, q: (b, 0, q)),
                pl.BlockSpec((1, 6, tile_eff), lambda b, q: (b, 0, q)),
                pl.BlockSpec(memory_space=pltpu.MemorySpace.SMEM),
            ],
            out_specs=pl.BlockSpec((1, T, tile_eff), lambda b, q: (b, 0, q)),
        ),
        compiler_params=pltpu.CompilerParams(
            dimension_semantics=("parallel", "parallel"),
            vmem_limit_bytes=32 * 1024 * 1024,
        ),
    )(logits_t, coords_t, tgt)

    # Back to the module's (B, Q, T) convention.
    return jnp.transpose(c_t[:, :, :Q], (0, 2, 1))


# ----------------------------------------------------------------------------
# Host-side glue: Hungarian assignment
# ----------------------------------------------------------------------------
# TODO(synk): linear_sum_assignment is a sequential combinatorial algorithm
# with no clean Pallas/TPU equivalent; it runs on host (scipy if available,
# exact brute force fallback for the tiny demo sizes).
try:
    from scipy.optimize import linear_sum_assignment as _scipy_lsa

    def linear_sum_assignment_np(cost):
        r, c = _scipy_lsa(np.asarray(cost, dtype=np.float64))
        return np.asarray(r, np.int64), np.asarray(c, np.int64)
except Exception:  # pragma: no cover - scipy not installed
    def linear_sum_assignment_np(cost):
        c = np.asarray(cost, dtype=np.float64)
        n_r, n_c = c.shape
        transposed = False
        if n_r < n_c:
            c = c.T
            n_r, n_c = c.shape
            transposed = True
        best_rows, best_cost = (), np.inf
        for rows in itertools.permutations(range(n_r), n_c):
            s = sum(c[rows[j], j] for j in range(n_c))
            if s < best_cost:
                best_cost, best_rows = s, rows
        row_ind = np.asarray(best_rows, dtype=np.int64)
        col_ind = np.arange(n_c, dtype=np.int64)
        if transposed:
            row_ind, col_ind = col_ind, row_ind
        order = np.argsort(row_ind)
        return row_ind[order], col_ind[order]


def hungarian_matcher_forward(outputs, targets, *, cost_class=1.0,
                              cost_coord=1.0, cost_bbox=1.0):
    """Mirrors HungarianMatcher.forward; cost matrix is computed on TPU."""
    tgt_labels = jnp.asarray(
        [[float(c) for c in t["categories"]] for t in targets],
        dtype=jnp.float32)                                                 # (B, T)
    kpts = np.stack([np.asarray(t["kpts"], dtype=np.float32) for t in targets])
    tgt_kpt = jnp.asarray(kpts[:, :3])                                     # (B, 3)
    tgt_bbox = jnp.asarray(kpts[:, 3:6])                                   # (B, 3)

    C = hungarian_cost_matrix(
        outputs["pred_logits"], outputs["pred_coords"], tgt_labels, tgt_kpt,
        tgt_bbox, cost_class=cost_class, cost_coord=cost_coord,
        cost_bbox=cost_bbox)
    C_np = np.asarray(jax.block_until_ready(C))
    # TODO(synk): in a training loop, overlap this host-side matching with the
    # next batch's device work instead of a hard block_until_ready.

    tgt_num = [list(t["categories"]).count(1) for t in targets]
    indices = [linear_sum_assignment_np(c[:, :tgt_num[i]])
               for i, c in enumerate(C_np)]
    full_indices = [linear_sum_assignment_np(c) for c in C_np]
    indices_i64 = [(np.asarray(i, np.int64), np.asarray(j, np.int64))
                   for i, j in indices]
    full_i64 = [(np.asarray(i, np.int64), np.asarray(j, np.int64))
                for i, j in full_indices]
    return C, (indices, indices_i64, full_indices, full_i64)


# ----------------------------------------------------------------------------
# Pure-JAX reference (PyTorch semantics) for the correctness check
# ----------------------------------------------------------------------------
def _reference_cost(pred_logits, pred_coords, tgt_labels, tgt_kpt, tgt_bbox,
                    cost_class, cost_coord, cost_bbox):
    probs = jax.nn.softmax(pred_logits.astype(jnp.float32), axis=-1)
    p1 = probs[:, :, 1]
    cost_label = jnp.abs(p1[:, :, None] - tgt_labels[:, None, :])
    c = pred_coords.astype(jnp.float32)
    r, th, ph = c[:, :, 0], c[:, :, 1], c[:, :, 2]
    d1 = r * jnp.cos(th + 0.5 * math.pi) * jnp.cos(ph)
    d3 = r * jnp.sin(th + 0.5 * math.pi) * jnp.cos(ph)
    d2 = r * jnp.sin(ph)
    kpt = jnp.stack([d1, d2, d3], axis=2)
    cost_kpt = jnp.linalg.norm(kpt - tgt_kpt[:, None, :], axis=-1)
    cost_boundary = jnp.linalg.norm(c[:, :, 3:6] - tgt_bbox[:, None, :],
                                    axis=-1)
    return (cost_coord * cost_kpt[:, :, None] + cost_class * cost_label +
            cost_bbox * cost_boundary[:, :, None])


# ----------------------------------------------------------------------------
if __name__ == "__main__":
    B, Q, NUM_CLASSES, T = 2, 8, 4, 3   # batch, queries, classes, targets

    key = jax.random.PRNGKey(0)
    k1, k2, k3 = jax.random.split(key, 3)
    pred_logits = jax.random.normal(k1, (B, Q, NUM_CLASSES), dtype=jnp.float32)
    pred_coords = jax.random.uniform(k2, (B, Q, 6), dtype=jnp.float32)
    kpts_np = np.asarray(jax.random.uniform(k3, (B, 6), dtype=jnp.float32))

    outputs = {"pred_logits": pred_logits, "pred_coords": pred_coords}
    targets = [
        {"categories": [1, 1, 0], "kpts": kpts_np[0]},
        {"categories": [1, 0, 1], "kpts": kpts_np[1]},
    ]

    C, _results = hungarian_matcher_forward(
        outputs, targets, cost_class=1.0, cost_coord=1.0, cost_bbox=1.0)

    # correctness check against pure-JAX reference (PyTorch semantics)
    tgt_labels = jnp.asarray(
        [[float(c) for c in t["categories"]] for t in targets], jnp.float32)
    tgt_kpt = jnp.asarray(kpts_np[:, :3])
    tgt_bbox = jnp.asarray(kpts_np[:, 3:6])
    ref = _reference_cost(pred_logits, pred_coords, tgt_labels, tgt_kpt,
                          tgt_bbox, 1.0, 1.0, 1.0)
    np.testing.assert_allclose(np.asarray(C), np.asarray(ref),
                               rtol=5e-5, atol=5e-5)

    jax.block_until_ready(C)
    print("KERNEL_OK")
</pallas_src>

<mosaic_0001>
module attributes {stable_mosaic.version = 11 : i64} {
  func.func @cost_kernel(%arg0: i32, %arg1: i32, %arg2: memref<1x4x128xf32, #tpu.memory_space<vmem>>, %arg3: memref<1x6x128xf32, #tpu.memory_space<vmem>>, %arg4: memref<2x9xf32, #tpu.memory_space<smem>>, %arg5: memref<1x3x128xf32, #tpu.memory_space<vmem>>) attributes {dimension_semantics = [#tpu.dimension_semantics<parallel>, #tpu.dimension_semantics<parallel>], iteration_bounds = array<i64: 2, 1>, scalar_prefetch = 0 : i64, scratch_operands = 0 : i64, tpu.core_type = #tpu.core_type<tc>, window_params = [{transform_indices = @transform_0, window_bounds = array<i64: 1, 4, 128>}, {transform_indices = @transform_1, window_bounds = array<i64: 1, 6, 128>}, {transform_indices = @transform_2, window_bounds = array<i64: 2, 9>}, {transform_indices = @transform_3, window_bounds = array<i64: 1, 3, 128>}]} {
    %c0 = arith.constant 0 : index
    %c0_0 = arith.constant 0 : index
    %c0_1 = arith.constant 0 : index
    %0 = vector.load %arg2[%c0, %c0_0, %c0_1] : memref<1x4x128xf32, #tpu.memory_space<vmem>>, vector<1x4x128xf32>
    %1 = vector.shape_cast %0 : vector<1x4x128xf32> to vector<4x128xf32>
    %c0_2 = arith.constant 0 : index
    %c0_3 = arith.constant 0 : index
    %c0_4 = arith.constant 0 : index
    %2 = vector.load %arg3[%c0_2, %c0_3, %c0_4] : memref<1x6x128xf32, #tpu.memory_space<vmem>>, vector<1x6x128xf32>
    %3 = vector.shape_cast %2 : vector<1x6x128xf32> to vector<6x128xf32>
    %4 = vector.extract_strided_slice %1 {offsets = [0, 0], sizes = [1, 128], strides = [1, 1]} : vector<4x128xf32> to vector<1x128xf32>
    %5 = vector.extract_strided_slice %1 {offsets = [1, 0], sizes = [1, 128], strides = [1, 1]} : vector<4x128xf32> to vector<1x128xf32>
    %6 = arith.maximumf %4, %5 : vector<1x128xf32>
    %7 = vector.extract_strided_slice %1 {offsets = [2, 0], sizes = [1, 128], strides = [1, 1]} : vector<4x128xf32> to vector<1x128xf32>
    %8 = arith.maximumf %6, %7 : vector<1x128xf32>
    %9 = vector.extract_strided_slice %1 {offsets = [3, 0], sizes = [1, 128], strides = [1, 1]} : vector<4x128xf32> to vector<1x128xf32>
    %10 = arith.maximumf %8, %9 : vector<1x128xf32>
    %11 = vector.extract_strided_slice %1 {offsets = [0, 0], sizes = [1, 128], strides = [1, 1]} : vector<4x128xf32> to vector<1x128xf32>
    %12 = arith.subf %11, %10 : vector<1x128xf32>
    %13 = math.exp %12 : vector<1x128xf32>
    %14 = vector.extract_strided_slice %1 {offsets = [1, 0], sizes = [1, 128], strides = [1, 1]} : vector<4x128xf32> to vector<1x128xf32>
    %15 = arith.subf %14, %10 : vector<1x128xf32>
    %16 = math.exp %15 : vector<1x128xf32>
    %17 = arith.addf %13, %16 : vector<1x128xf32>
    %18 = vector.extract_strided_slice %1 {offsets = [2, 0], sizes = [1, 128], strides = [1, 1]} : vector<4x128xf32> to vector<1x128xf32>
    %19 = arith.subf %18, %10 : vector<1x128xf32>
    %20 = math.exp %19 : vector<1x128xf32>
    %21 = arith.addf %17, %20 : vector<1x128xf32>
    %22 = vector.extract_strided_slice %1 {offsets = [3, 0], sizes = [1, 128], strides = [1, 1]} : vector<4x128xf32> to vector<1x128xf32>
    %23 = arith.subf %22, %10 : vector<1x128xf32>
    %24 = math.exp %23 : vector<1x128xf32>
    %25 = arith.addf %21, %24 : vector<1x128xf32>
    %26 = tpu.reciprocal %25 : vector<1x128xf32> -> vector<1x128xf32>
    %27 = arith.mulf %16, %26 : vector<1x128xf32>
    %28 = vector.extract_strided_slice %3 {offsets = [0, 0], sizes = [1, 128], strides = [1, 1]} : vector<6x128xf32> to vector<1x128xf32>
    %29 = vector.extract_strided_slice %3 {offsets = [1, 0], sizes = [1, 128], strides = [1, 1]} : vector<6x128xf32> to vector<1x128xf32>
    %30 = vector.extract_strided_slice %3 {offsets = [2, 0], sizes = [1, 128], strides = [1, 1]} : vector<6x128xf32> to vector<1x128xf32>
    %31 = math.sin %29 : vector<1x128xf32>
    %32 = math.cos %29 : vector<1x128xf32>
    %33 = math.sin %30 : vector<1x128xf32>
    %34 = math.cos %30 : vector<1x128xf32>
    %cst = arith.constant 0.000000e+00 : f32
    %35 = vector.broadcast %cst : f32 to vector<1x128xf32>
    %36 = arith.subf %35, %28 : vector<1x128xf32>
    %37 = arith.mulf %36, %31 : vector<1x128xf32>
    %38 = arith.mulf %37, %34 : vector<1x128xf32>
    %39 = arith.mulf %28, %32 : vector<1x128xf32>
    %40 = arith.mulf %39, %34 : vector<1x128xf32>
    %41 = arith.mulf %28, %33 : vector<1x128xf32>
    %42 = arith.index_cast %arg0 : i32 to index
    %c3 = arith.constant 3 : index
    %43 = memref.load %arg4[%42, %c3] : memref<2x9xf32, #tpu.memory_space<smem>>
    %44 = arith.index_cast %arg0 : i32 to index
    %c4 = arith.constant 4 : index
    %45 = memref.load %arg4[%44, %c4] : memref<2x9xf32, #tpu.memory_space<smem>>
    %46 = arith.index_cast %arg0 : i32 to index
    %c5 = arith.constant 5 : index
    %47 = memref.load %arg4[%46, %c5] : memref<2x9xf32, #tpu.memory_space<smem>>
    %48 = arith.index_cast %arg0 : i32 to index
    %c6 = arith.constant 6 : index
    %49 = memref.load %arg4[%48, %c6] : memref<2x9xf32, #tpu.memory_space<smem>>
    %50 = arith.index_cast %arg0 : i32 to index
    %c7 = arith.constant 7 : index
    %51 = memref.load %arg4[%50, %c7] : memref<2x9xf32, #tpu.memory_space<smem>>
    %52 = arith.index_cast %arg0 : i32 to index
    %c8 = arith.constant 8 : index
    %53 = memref.load %arg4[%52, %c8] : memref<2x9xf32, #tpu.memory_space<smem>>
    %54 = vector.broadcast %43 : f32 to vector<1x128xf32>
    %55 = arith.subf %38, %54 : vector<1x128xf32>
    %56 = arith.mulf %55, %55 : vector<1x128xf32>
    %57 = vector.broadcast %45 : f32 to vector<1x128xf32>
    %58 = arith.subf %41, %57 : vector<1x128xf32>
    %59 = arith.mulf %58, %58 : vector<1x128xf32>
    %60 = arith.addf %56, %59 : vector<1x128xf32>
    %61 = vector.broadcast %47 : f32 to vector<1x128xf32>
    %62 = arith.subf %40, %61 : vector<1x128xf32>
    %63 = arith.mulf %62, %62 : vector<1x128xf32>
    %64 = arith.addf %60, %63 : vector<1x128xf32>
    %65 = math.sqrt %64 : vector<1x128xf32>
    %66 = vector.extract_strided_slice %3 {offsets = [3, 0], sizes = [1, 128], strides = [1, 1]} : vector<6x128xf32> to vector<1x128xf32>
    %67 = vector.broadcast %49 : f32 to vector<1x128xf32>
    %68 = arith.subf %66, %67 : vector<1x128xf32>
    %69 = arith.mulf %68, %68 : vector<1x128xf32>
    %70 = vector.extract_strided_slice %3 {offsets = [4, 0], sizes = [1, 128], strides = [1, 1]} : vector<6x128xf32> to vector<1x128xf32>
    %71 = vector.broadcast %51 : f32 to vector<1x128xf32>
    %72 = arith.subf %70, %71 : vector<1x128xf32>
    %73 = arith.mulf %72, %72 : vector<1x128xf32>
    %74 = arith.addf %69, %73 : vector<1x128xf32>
    %75 = vector.extract_strided_slice %3 {offsets = [5, 0], sizes = [1, 128], strides = [1, 1]} : vector<6x128xf32> to vector<1x128xf32>
    %76 = vector.broadcast %53 : f32 to vector<1x128xf32>
    %77 = arith.subf %75, %76 : vector<1x128xf32>
    %78 = arith.mulf %77, %77 : vector<1x128xf32>
    %79 = arith.addf %74, %78 : vector<1x128xf32>
    %80 = math.sqrt %79 : vector<1x128xf32>
    %cst_5 = arith.constant 1.000000e+00 : f32
    %81 = vector.broadcast %cst_5 : f32 to vector<1x128xf32>
    %82 = arith.mulf %81, %65 : vector<1x128xf32>
    %cst_6 = arith.constant 1.000000e+00 : f32
    %83 = vector.broadcast %cst_6 : f32 to vector<1x128xf32>
    %84 = arith.mulf %83, %80 : vector<1x128xf32>
    %85 = arith.addf %82, %84 : vector<1x128xf32>
    %86 = arith.index_cast %arg0 : i32 to index
    %c0_7 = arith.constant 0 : index
    %87 = memref.load %arg4[%86, %c0_7] : memref<2x9xf32, #tpu.memory_space<smem>>
    %88 = vector.broadcast %87 : f32 to vector<1x128xf32>
    %89 = arith.subf %27, %88 : vector<1x128xf32>
    %90 = math.absf %89 : vector<1x128xf32>
    %cst_8 = arith.constant 1.000000e+00 : f32
    %91 = vector.broadcast %cst_8 : f32 to vector<1x128xf32>
    %92 = arith.mulf %91, %90 : vector<1x128xf32>
    %93 = arith.addf %85, %92 : vector<1x128xf32>
    %94 = arith.index_cast %arg0 : i32 to index
    %c1 = arith.constant 1 : index
    %95 = memref.load %arg4[%94, %c1] : memref<2x9xf32, #tpu.memory_space<smem>>
    %96 = vector.broadcast %95 : f32 to vector<1x128xf32>
    %97 = arith.subf %27, %96 : vector<1x128xf32>
    %98 = math.absf %97 : vector<1x128xf32>
    %cst_9 = arith.constant 1.000000e+00 : f32
    %99 = vector.broadcast %cst_9 : f32 to vector<1x128xf32>
    %100 = arith.mulf %99, %98 : vector<1x128xf32>
    %101 = arith.addf %85, %100 : vector<1x128xf32>
    %102 = arith.index_cast %arg0 : i32 to index
    %c2 = arith.constant 2 : index
    %103 = memref.load %arg4[%102, %c2] : memref<2x9xf32, #tpu.memory_space<smem>>
    %104 = vector.broadcast %103 : f32 to vector<1x128xf32>
    %105 = arith.subf %27, %104 : vector<1x128xf32>
    %106 = math.absf %105 : vector<1x128xf32>
    %cst_10 = arith.constant 1.000000e+00 : f32
    %107 = vector.broadcast %cst_10 : f32 to vector<1x128xf32>
    %108 = arith.mulf %107, %106 : vector<1x128xf32>
    %109 = arith.addf %85, %108 : vector<1x128xf32>
    %110 = tpu.concatenate %93, %101, %109 in 0 : vector<1x128xf32>, vector<1x128xf32>, vector<1x128xf32> -> vector<3x128xf32>
    %111 = vector.shape_cast %110 : vector<3x128xf32> to vector<1x3x128xf32>
    %c0_11 = arith.constant 0 : index
    %c0_12 = arith.constant 0 : index
    %c0_13 = arith.constant 0 : index
    %112 = vector.load %arg5[%c0_11, %c0_12, %c0_13] : memref<1x3x128xf32, #tpu.memory_space<vmem>>, vector<1x3x128xf32>
    tpu.vector_store %arg5[%c0_11, %c0_12, %c0_13], %111 {strides = array<i32>} : memref<1x3x128xf32, #tpu.memory_space<vmem>>, vector<1x3x128xf32>,
    return
  }
  func.func @transform_0(%arg0: i32, %arg1: i32) -> (i32, i32, i32) {
    %c0_i32 = arith.constant 0 : i32
    %c0_i32_0 = arith.constant 0 : i32
    return %arg0, %c0_i32, %arg1 : i32, i32, i32
  }
  func.func @transform_1(%arg0: i32, %arg1: i32) -> (i32, i32, i32) {
    %c0_i32 = arith.constant 0 : i32
    %c0_i32_0 = arith.constant 0 : i32
    return %arg0, %c0_i32, %arg1 : i32, i32, i32
  }
  func.func @transform_2(%arg0: i32, %arg1: i32) -> (i32, i32) {
    %c0_i32 = arith.constant 0 : i32
    %c0_i32_0 = arith.constant 0 : i32
    %c0_i32_1 = arith.constant 0 : i32
    return %c0_i32, %c0_i32_0 : i32, i32
  }
  func.func @transform_3(%arg0: i32, %arg1: i32) -> (i32, i32, i32) {
    %c0_i32 = arith.constant 0 : i32
    %c0_i32_0 = arith.constant 0 : i32
    return %arg0, %c0_i32, %arg1 : i32, i32, i32
  }
}

</mosaic_0001>

<llo_original>
// kernel: hungarian_cost_matrix.1
$region0: #{hungarian_cost_matrix.1}
  #allocation0 [shape = 'u32[]', space=smem, size = 0x4, offset = 0x4, fixed_abs, tag = 'smem constant byte address 0x4 - core index']
  #allocation1 [shape = 'u32[144,128]{1,0:T(1,128)}', space=vmem, size = 0x12000, scoped, tag = 'internal scratch']
  %s0 = inlined_call_operand.vmem [shape: f32[2,4,128], index: 0, kind: input, shape index: {}]
  %s1 = inlined_call_operand.vmem [shape: f32[2,6,128], index: 1, kind: input, shape index: {}]
  %s2 = inlined_call_operand.vmem [shape: f32[2,9], index: 2, kind: input, shape index: {}]
  %s3 = inlined_call_operand.vmem [shape: f32[2,3,128], index: 3, kind: output, shape index: {}]
  %s4 = sld [smem:[#allocation0]]
  $region49: #{hungarian_cost_matrix.1} parent=0
    _
  %s6 = ssub.s32 1, %s4
  %s7 = scalar_select 0, %s6, %s4
  $region1: #{hungarian_cost_matrix.1} parent=0
    #allocation2 [shape = 'u8[1024]{0}', space=smem, size = 0x400, scoped, tag = 'input window, operand 2, single buffered']
    #allocation3 [shape = 's32[2]{0}', space=sflag, size = 0x8, scoped, tag = 'scoped memory for hungarian_cost_matrix.1']
    %8 = vsyncpa [#allocation3], 0
    loop: start=0, step=1, limit=4
    $region2: #{hungarian_cost_matrix.1} parent=1 // loop_pre_header
      _
    $region3: #{hungarian_cost_matrix.1} parent=1 // loop_header
      %s10 = sphi 0, %s14
      %p11 = scmp.ge.s32.totalorder %s10, 4
      %s17 = sphi 0, %s29
      %s18 = sphi 0, %s25
      %s19 = sphi 0, %s17
      %s20 = sphi 0, %s18
      %s21 = sphi 0, %s19
      %s22 = sphi 0, %s20
      %s34 = sphi 0, %s36
      %s37 = sphi 0, %s34
      %s38 = sphi 0, %s37
      %s54 = sphi 0, %s38
      %s62 = sphi 0, %s64
      %s65 = sphi 0, %s62
      %s66 = sphi 0, %s65
      %s82 = sphi 0, %s66
      %s86 = sphi 0, %s86
      %s88 = sphi 0, %s86
      %s89 = sphi 0, %s88
      %s103 = sphi 0, %s89
      %s111 = sphi 0, %s113
      %s114 = sphi 0, %s111
      %s115 = sphi 0, %s114
      %s131 = sphi 0, %s115
    $region4: #{hungarian_cost_matrix.1} parent=1 // loop_header_branch
      %13 = sbr.rel (%p11) target = $region8
    $region5: #{hungarian_cost_matrix.1} parent=1 // loop_body
      %s15 = ssub.s32 %s10, 1
      %s16 = ssub.s32 %s10, 2
      %s23 = sadd.s32 1, %s18
      %p24 = scmp.ge.s32.totalorder %s23, 1
      %s25 = scalar_select %p24, 0, %s23
      %s26 = sadd.s32 1, %s17
      %s27 = scalar_select %p24, %s26, %s17
      %p28 = scmp.ge.s32.totalorder %s27, 2
      %s29 = scalar_select %p28, 0, %s27
      %s30 = ssub.s32 %s17, %s29
      %s31 = ssub.s32 %s18, %s25
      %s32 = sor.u32 %s30, %s31
      %p33 = scmp.eq.s32.totalorder %s32, 0
      %s35 = sadd.s32 %s34, 1
      %s36 = scalar_select %p33, %s34, %s35
      %p39 = pneg %p33
      %p40 = scmp.eq.s32.totalorder %s10, 1
      %p41 = por %p39, %p40
      %p42 = scmp.ne.s32.totalorder %s34, %s37
      %p43 = scmp.eq.s32.totalorder %s10, 0
      %p44 = por %p42, %p43
      %p45 = scmp.ne.s32.totalorder %s34, %s37
      %p46 = scmp.eq.s32.totalorder %s15, 1
      %p47 = por %p45, %p46
      %p48 = scmp.ne.s32.totalorder %s37, %s38
      %p49 = scmp.eq.s32.totalorder %s15, 0
      %p50 = por %p48, %p49
      %p51 = scmp.ne.s32.totalorder %s37, %s38
      %p52 = scmp.eq.s32.totalorder %s16, 1
      %p53 = por %p51, %p52
      %p55 = scmp.ne.s32.totalorder %s38, %s54
      %p56 = scmp.eq.s32.totalorder %s16, 0
      %p57 = por %p55, %p56
      %s58 = ssub.s32 %s17, %s29
      %s59 = ssub.s32 %s18, %s25
      %s60 = sor.u32 %s58, %s59
      %p61 = scmp.eq.s32.totalorder %s60, 0
      %s63 = sadd.s32 %s62, 1
      %s64 = scalar_select %p61, %s62, %s63
      %p67 = pneg %p61
      %p68 = scmp.eq.s32.totalorder %s10, 1
      %p69 = por %p67, %p68
      %p70 = scmp.ne.s32.totalorder %s62, %s65
      %p71 = scmp.eq.s32.totalorder %s10, 0
      %p72 = por %p70, %p71
      %p73 = scmp.ne.s32.totalorder %s62, %s65
      %p74 = scmp.eq.s32.totalorder %s15, 1
      %p75 = por %p73, %p74
      %p76 = scmp.ne.s32.totalorder %s65, %s66
      %p77 = scmp.eq.s32.totalorder %s15, 0
      %p78 = por %p76, %p77
      %p79 = scmp.ne.s32.totalorder %s65, %s66
      %p80 = scmp.eq.s32.totalorder %s16, 1
      %p81 = por %p79, %p80
      %p83 = scmp.ne.s32.totalorder %s66, %s82
      %p84 = scmp.eq.s32.totalorder %s16, 0
      %p85 = por %p83, %p84
      %s87 = sadd.s32 %s86, 1
      %p90 = scmp.eq.s32.totalorder %s10, 1
      %p91 = scmp.ne.s32.totalorder %s86, %s88
      %p92 = scmp.eq.s32.totalorder %s10, 0
      %p93 = por %p91, %p92
      %p94 = scmp.ne.s32.totalorder %s86, %s88
      %p95 = scmp.eq.s32.totalorder %s15, 1
      %p96 = por %p94, %p95
      %p97 = scmp.ne.s32.totalorder %s88, %s89
      %p98 = scmp.eq.s32.totalorder %s15, 0
      %p99 = por %p97, %p98
      %p100 = scmp.ne.s32.totalorder %s88, %s89
      %p101 = scmp.eq.s32.totalorder %s16, 1
      %p102 = por %p100, %p101
      %p104 = scmp.ne.s32.totalorder %s89, %s103
      %p105 = scmp.eq.s32.totalorder %s16, 0
      %p106 = por %p104, %p105
      %s107 = ssub.s32 %s17, %s29
      %s108 = ssub.s32 %s18, %s25
      %s109 = sor.u32 %s107, %s108
      %p110 = scmp.eq.s32.totalorder %s109, 0
      %s112 = sadd.s32 %s111, 1
      %s113 = scalar_select %p110, %s111, %s112
      %p116 = pneg %p110
      %p117 = scmp.eq.s32.totalorder %s10, 1
      %p118 = por %p116, %p117
      %p119 = scmp.ne.s32.totalorder %s111, %s114
      %p120 = scmp.eq.s32.totalorder %s10, 0
      %p121 = por %p119, %p120
      %p122 = scmp.ne.s32.totalorder %s111, %s114
      %p123 = scmp.eq.s32.totalorder %s15, 1
      %p124 = por %p122, %p123
      %p125 = scmp.ne.s32.totalorder %s114, %s115
      %p126 = scmp.eq.s32.totalorder %s15, 0
      %p127 = por %p125, %p126
      %p128 = scmp.ne.s32.totalorder %s114, %s115
      %p129 = scmp.eq.s32.totalorder %s16, 1
      %p130 = por %p128, %p129
      %p132 = scmp.ne.s32.totalorder %s115, %s131
      %p133 = scmp.eq.s32.totalorder %s16, 0
      %p134 = por %p132, %p133
      %p135 = scmp.le.s32.totalorder 1, %s10
      %p136 = scmp.lt.s32.totalorder %s10, 3
      %p137 = pnand %p135, %p136
      %p138 = pneg %p137
      // Predicated region
      $region9: #{hungarian_cost_matrix.1} parent=5 // pred_check
        _
      $region10: #{hungarian_cost_matrix.1} parent=5 // pred_check_branch
        %140 = sbr.rel (%p137) target = $region12
      $region11: #{hungarian_cost_matrix.1} parent=5 // pred_region
        %s141 = ssub.s32 %s10, 1
        // Predicated region
        $region13: #{hungarian_cost_matrix.1} parent=11 // pred_check
          %p142 = pneg %p99
        $region14: #{hungarian_cost_matrix.1} parent=11 // pred_check_branch
          %144 = sbr.rel (%p142) target = $region16
        $region15: #{hungarian_cost_matrix.1} parent=11 // pred_region
          %s146 = ssub.s32 32, 32
          %147 = vsyncadd [#allocation3], %s146
          %s149 = sshll.u32 %s2, 4
          %s150 = int_to_ptr.vmem [resolvable:$true] %s149
          %152 = dma.vmem_to_smem %s150, 32, [#allocation2], [#allocation3]
        $region16: #{hungarian_cost_matrix.1} parent=11 // pred_fallthru
          _
      $region12: #{hungarian_cost_matrix.1} parent=5 // pred_fallthru
        _
      %p153 = scmp.lt.s32.totalorder %s10, 2
      // Predicated region
      $region17: #{hungarian_cost_matrix.1} parent=5 // pred_check
        %p154 = pneg %p153
      $region18: #{hungarian_cost_matrix.1} parent=5 // pred_check_branch
        %156 = sbr.rel (%p154) target = $region20
      $region19: #{hungarian_cost_matrix.1} parent=5 // pred_region
        // Predicated region
        $region21: #{hungarian_cost_matrix.1} parent=19 // pred_check
          %p157 = pneg %p44
        $region22: #{hungarian_cost_matrix.1} parent=19 // pred_check_branch
          %159 = sbr.rel (%p157) target = $region24
        $region23: #{hungarian_cost_matrix.1} parent=19 // pred_region
          %p160 = scmp.lt.s32.totalorder %s17, 1
          %s161 = scalar_select %p160, %s17, 1
          %p162 = scmp.lt.s32.totalorder %s18, 0
          %s163 = scalar_select %p162, %s18, 0
          %s164 = sadd.s32 %s163, %s161
          %s165 = smul.addr %s164, 4
          %s166 = scalar_lea.vmem %s0, %s165
        $region24: #{hungarian_cost_matrix.1} parent=19 // pred_fallthru
          _
        // Predicated region
        $region25: #{hungarian_cost_matrix.1} parent=19 // pred_check
          %p167 = pneg %p72
        $region26: #{hungarian_cost_matrix.1} parent=19 // pred_check_branch
          %169 = sbr.rel (%p167) target = $region28
        $region27: #{hungarian_cost_matrix.1} parent=19 // pred_region
          %p170 = scmp.lt.s32.totalorder %s17, 1
          %s171 = scalar_select %p170, %s17, 1
          %p172 = scmp.lt.s32.totalorder %s18, 0
          %s173 = scalar_select %p172, %s18, 0
          %s174 = sadd.s32 %s173, %s171
          %s175 = smul.addr %s174, 8
          %s176 = scalar_lea.vmem %s1, %s175
        $region28: #{hungarian_cost_matrix.1} parent=19 // pred_fallthru
          _
      $region20: #{hungarian_cost_matrix.1} parent=5 // pred_fallthru
        _
      %p177 = scmp.le.s32.totalorder 1, %s10
      %p178 = scmp.lt.s32.totalorder %s10, 3
      %p179 = pnand %p177, %p178
      %p180 = pneg %p179
      // Predicated region
      $region29: #{hungarian_cost_matrix.1} parent=5 // pred_check
        _
      $region30: #{hungarian_cost_matrix.1} parent=5 // pred_check_branch
        %182 = sbr.rel (%p179) target = $region32
      $region31: #{hungarian_cost_matrix.1} parent=5 // pred_region
        %s183 = ssub.s32 %s10, 1
        // Predicated region
        $region33: #{hungarian_cost_matrix.1} parent=31 // pred_check
          %p184 = pneg %p99
        $region34: #{hungarian_cost_matrix.1} parent=31 // pred_check_branch
          %186 = sbr.rel (%p184) target = $region36
        $region35: #{hungarian_cost_matrix.1} parent=31 // pred_region
          %187 = dma.done [#allocation3], 32
        $region36: #{hungarian_cost_matrix.1} parent=31 // pred_fallthru
          _
        %188 = sfence
        %p189 = scmp.lt.s32.totalorder %s19, 1
        %s190 = scalar_select %p189, %s19, 1
        %p191 = scmp.lt.s32.totalorder %s20, 0
        %s192 = scalar_select %p191, %s20, 0
        %s193 = sadd.s32 %s192, %s190
        %s194 = smul.addr %s193, 4
        %s195 = scalar_lea.vmem %s0, %s194
        %p196 = pneg %p50
        %p197 = pneg %p47
        %p198 = scmp.lt.s32.totalorder %s19, 1
        %s199 = scalar_select %p198, %s19, 1
        %p200 = scmp.lt.s32.totalorder %s20, 0
        %s201 = scalar_select %p200, %s20, 0
        %s202 = sadd.s32 %s201, %s199
        %s203 = smul.addr %s202, 8
        %s204 = scalar_lea.vmem %s1, %s203
        %p205 = pneg %p78
        %p206 = pneg %p75
        %p207 = pneg %p99
        %p208 = pneg %p96
        %p209 = pneg %p127
        %p210 = pneg %p124
        %p211 = scmp.lt.s32.totalorder %s19, 1
        %s212 = scalar_select %p211, %s19, 1
        %p213 = scmp.lt.s32.totalorder %s20, 0
        %s214 = scalar_select %p213, %s20, 0
        %s215 = sadd.s32 %s214, %s212
        %s216 = smul.addr %s215, 4
        %s217 = scalar_lea.vmem %s3, %s216
        %p218 = scmp.lt.s32.totalorder %s19, 1
        %s219 = scalar_select %p218, %s19, 1
        %p220 = scmp.lt.s32.totalorder %s20, 0
        %s221 = scalar_select %p220, %s20, 0
        %s222 = sadd.s32 %s221, %s219
        %s223 = smul.addr %s222, 4
        %s224 = scalar_lea.vmem %s0, %s223
        %p225 = scmp.lt.s32.totalorder %s19, 1
        %s226 = scalar_select %p225, %s19, 1
        %p227 = scmp.lt.s32.totalorder %s20, 0
        %s228 = scalar_select %p227, %s20, 0
        %s229 = sadd.s32 %s228, %s226
        %s230 = smul.addr %s229, 8
        %s231 = scalar_lea.vmem %s1, %s230
        %p232 = scmp.lt.s32.totalorder %s19, 1
        %s233 = scalar_select %p232, %s19, 1
        %p234 = scmp.lt.s32.totalorder %s20, 0
        %s235 = scalar_select %p234, %s20, 0
        %s236 = sadd.s32 %s235, %s233
        %s237 = smul.addr %s236, 4
        %s238 = scalar_lea.vmem %s3, %s237
        %v239 = vld [vmem:[%s224] sm:$0xf]
        %v240 = vld [vmem:[%s231] sm:$0x3f]
        %v242 = vrot.slane %v239, 1
        %v244 = vmax.f32 %v239, %v242
        %v245 = vrot.slane %v239, 2
        %v247 = vmax.f32 %v244, %v245
        %v248 = vrot.slane %v239, 3
        %v250 = vmax.f32 %v247, %v248
        %v251 = vsub.f32 %v239, %v250
        %v252 = vmul.f32 %v251, 1.442695
        %v253 = vpow.pop %v252
        %v255 = vrot.slane %v250, 7
        %v257 = vsub.f32 %v239, %v255
        %v258 = vmul.f32 %v257, 1.442695
        %v259 = vpow.pop %v258
        %v261 = vrot.slane %v259, 1
        %v263 = vadd.f32 %v253, %v261
        %v264 = vrot.slane %v250, 6
        %v266 = vsub.f32 %v239, %v264
        %v267 = vmul.f32 %v266, 1.442695
        %v268 = vpow.pop %v267
        %v270 = vrot.slane %v268, 2
        %v272 = vadd.f32 %v263, %v270
        %v273 = vrot.slane %v250, 5
        %v275 = vsub.f32 %v239, %v273
        %v276 = vmul.f32 %v275, 1.442695
        %v277 = vpow.pop %v276
        %v279 = vrot.slane %v277, 3
        %v281 = vadd.f32 %v272, %v279
        %v282 = vrcp.pop %v281
        %v284 = vrot.slane %v282, 7
        %v286 = vmul.f32 %v259, %v284
        %v287 = vand.u32 2147483647, %v240
        %vm288 = vcmp.le.f32.partialorder %v287, 0.7853982
        %vm289 = vcmp.lt.s32.totalorder %v240, 0
        %v290 = vand.u32 %v240, 2139095040
        %v291 = vshrl.u32 %v290, 23
        %v292 = vsub.s32 %v291, 127
        %v293 = vand.u32 2147483647, %v240
        %v294 = vand.u32 %v293, 8388607
        %v295 = vor.u32 %v294, 8388608
        %v296 = vsub.s32 0, %v295
        %v297 = vadd.s32 %v292, 1
        %vm298 = vcmp.gt.s32.totalorder %v297, 0
        %v299 = vsel %vm298, %v297, 0
        %v300 = vshrl.u32 %v299, 5
        %v301 = vand.u32 %v299, 31
        %v302 = vsub.s32 32, %v301
        %v303 = vshrl.u32 683565275, %v302
        %v304 = vshll.u32 683565275, %v301
        %v305 = vshrl.u32 2475754826, %v302
        %v306 = vor.u32 %v304, %v305
        %v307 = vshll.u32 2475754826, %v301
        %v308 = vshrl.u32 2131351028, %v302
        %v309 = vor.u32 %v307, %v308
        %v310 = vshll.u32 2131351028, %v301
        %v311 = vshrl.u32 2102212464, %v302
        %v312 = vor.u32 %v310, %v311
        %v313 = vshll.u32 2102212464, %v301
        %v314 = vshrl.u32 920167782, %v302
        %v315 = vor.u32 %v313, %v314
        %v316 = vshll.u32 920167782, %v301
        %v317 = vshrl.u32 1326507024, %v302
        %v318 = vor.u32 %v316, %v317
        %vm319 = vcmp.lt.s32.totalorder %v300, 1
        %vm320 = vcmp.lt.s32.totalorder %v300, 2
        %vm321 = vcmp.lt.s32.totalorder %v300, 3
        %vm322 = vcmp.lt.s32.totalorder %v300, 4
        %v323 = vsel %vm319, %v303, %v306
        %v324 = vsel %vm322, %v312, 2102212464
        %v325 = vsel %vm321, %v309, %v324
        %v326 = vsel %vm320, %v323, %v325
        %v327 = vsel %vm319, %v306, %v309
        %v328 = vsel %vm322, %v315, 920167782
        %v329 = vsel %vm321, %v312, %v328
        %v330 = vsel %vm320, %v327, %v329
        %v331 = vsel %vm319, %v309, %v312
        %v332 = vsel %vm322, %v318, 1326507024
        %v333 = vsel %vm321, %v315, %v332
        %v334 = vsel %vm320, %v331, %v333
        %v335 = vshll.u32 %v295, 8
        %v336 = vmul.u32.u64.compose %v335, %v334
        %v337 = vextract.low.u32 %v336
        %v338 = vextract.high.u32 %v336
        %v339 = vmul.u32.u64.compose %v335, %v330
        %v340 = vextract.low.u32 %v339
        %v341 = vextract.high.u32 %v339
        %v342 = vmul.u32 %v335, %v326
        %v343 = vadd.s32 %v338, %v340
        %vm344 = vc.u32 %v338, %v340
        %v345 = vadd.s32 %v341, 1
        %v346 = vsel %vm344, %v345, %v341
        %v347 = vadd.s32 %v342, %v346
        %v348 = vadd.s32 %v347, 536870912
        %v349 = vshrl.u32 %v348, 30
        %v350 = vshll.u32 %v349, 30
        %v351 = vsub.s32 %v347, %v350
        %vm352 = vcmp.lt.s32.totalorder %v351, 0
        %v353 = vsub.s32 0, %v351
        %v354 = vsel %vm352, %v353, %v351
        %v355 = vclz %v354
        %v356 = vsub.s32 %v355, 2
        %vm357 = vcmp.gt.s32.totalorder 0, %v356
        %v358 = vsel %vm357, 0, %v356
        %v359 = vsub.s32 32, %v358
        %v360 = vshll.u32 %v351, %v358
        %v361 = vshrl.u32 %v343, %v359
        %v362 = vor.u32 %v360, %v361
        %v363 = vsub.s32 4294967266, %v358
        %v364 = vadd.s32 %v363, 127
        %v365 = vshll.u32 %v364, 23
        %v366 = vor.u32 4788187, %v365
        %v367 = vand.u32 2147483647, %v366
        %v369 = vcvt.s32.f32 %v362
        %v370 = vmul.f32 %v369, %v367
        %v371 = vxor.u32 %v370, 2147483648
        %v372 = vsel %vm289, %v371, %v370
        %v373 = vsub.s32 4, %v349
        %v374 = vsel %vm289, %v373, %v349
        %v375 = vsel %vm288, %v240, %v372
        %v376 = vsel %vm288, 0, %v374
        %v377 = vcosq.f32.pop %v375
        %v378 = vsinq.f32.pop %v375
        %vm379 = vweird.f32 %v240
        %v380 = vadd.s32 %v376, 3
        %v381 = vand.u32 %v380, 3
        %vm382 = vcmp.lt.s32.totalorder %v381, 2
        %vm383 = vcmp.eq.s32.totalorder %v381, 0
        %v384 = vxor.u32 %v378, 2147483648
        %v385 = vsel %vm383, %v377, %v384
        %vm386 = vcmp.eq.s32.totalorder %v381, 2
        %v387 = vxor.u32 %v377, 2147483648
        %v388 = vsel %vm386, %v387, %v378
        %v389 = vsel %vm382, %v385, %v388
        %v390 = vsel %vm379, nan, %v389
        %v391 = vand.u32 2147483647, %v240
        %vm392 = vcmp.le.f32.partialorder %v391, 0.7853982
        %vm393 = vcmp.lt.s32.totalorder %v240, 0
        %v394 = vand.u32 %v240, 2139095040
        %v395 = vshrl.u32 %v394, 23
        %v396 = vsub.s32 %v395, 127
        %v397 = vand.u32 2147483647, %v240
        %v398 = vand.u32 %v397, 8388607
        %v399 = vor.u32 %v398, 8388608
        %v400 = vsub.s32 0, %v399
        %v401 = vadd.s32 %v396, 1
        %vm402 = vcmp.gt.s32.totalorder %v401, 0
        %v403 = vsel %vm402, %v401, 0
        %v404 = vshrl.u32 %v403, 5
        %v405 = vand.u32 %v403, 31
        %v406 = vsub.s32 32, %v405
        %v407 = vshrl.u32 683565275, %v406
        %v408 = vshll.u32 683565275, %v405
        %v409 = vshrl.u32 2475754826, %v406
        %v410 = vor.u32 %v408, %v409
        %v411 = vshll.u32 2475754826, %v405
        %v412 = vshrl.u32 2131351028, %v406
        %v413 = vor.u32 %v411, %v412
        %v414 = vshll.u32 2131351028, %v405
        %v415 = vshrl.u32 2102212464, %v406
        %v416 = vor.u32 %v414, %v415
        %v417 = vshll.u32 2102212464, %v405
        %v418 = vshrl.u32 920167782, %v406
        %v419 = vor.u32 %v417, %v418
        %v420 = vshll.u32 920167782, %v405
        %v421 = vshrl.u32 1326507024, %v406
        %v422 = vor.u32 %v420, %v421
        %vm423 = vcmp.lt.s32.totalorder %v404, 1
        %vm424 = vcmp.lt.s32.totalorder %v404, 2
        %vm425 = vcmp.lt.s32.totalorder %v404, 3
        %vm426 = vcmp.lt.s32.totalorder %v404, 4
        %v427 = vsel %vm423, %v407, %v410
        %v428 = vsel %vm426, %v416, 2102212464
        %v429 = vsel %vm425, %v413, %v428
        %v430 = vsel %vm424, %v427, %v429
        %v431 = vsel %vm423, %v410, %v413
        %v432 = vsel %vm426, %v419, 920167782
        %v433 = vsel %vm425, %v416, %v432
        %v434 = vsel %vm424, %v431, %v433
        %v435 = vsel %vm423, %v413, %v416
        %v436 = vsel %vm426, %v422, 1326507024
        %v437 = vsel %vm425, %v419, %v436
        %v438 = vsel %vm424, %v435, %v437
        %v439 = vshll.u32 %v399, 8
        %v440 = vmul.u32.u64.compose %v439, %v438
        %v441 = vextract.low.u32 %v440
        %v442 = vextract.high.u32 %v440
        %v443 = vmul.u32.u64.compose %v439, %v434
        %v444 = vextract.low.u32 %v443
        %v445 = vextract.high.u32 %v443
        %v446 = vmul.u32 %v439, %v430
        %v447 = vadd.s32 %v442, %v444
        %vm448 = vc.u32 %v442, %v444
        %v449 = vadd.s32 %v445, 1
        %v450 = vsel %vm448, %v449, %v445
        %v451 = vadd.s32 %v446, %v450
        %v452 = vadd.s32 %v451, 536870912
        %v453 = vshrl.u32 %v452, 30
        %v454 = vshll.u32 %v453, 30
        %v455 = vsub.s32 %v451, %v454
        %vm456 = vcmp.lt.s32.totalorder %v455, 0
        %v457 = vsub.s32 0, %v455
        %v458 = vsel %vm456, %v457, %v455
        %v459 = vclz %v458
        %v460 = vsub.s32 %v459, 2
        %vm461 = vcmp.gt.s32.totalorder 0, %v460
        %v462 = vsel %vm461, 0, %v460
        %v463 = vsub.s32 32, %v462
        %v464 = vshll.u32 %v455, %v462
        %v465 = vshrl.u32 %v447, %v463
        %v466 = vor.u32 %v464, %v465
        %v467 = vsub.s32 4294967266, %v462
        %v468 = vadd.s32 %v467, 127
        %v469 = vshll.u32 %v468, 23
        %v470 = vor.u32 4788187, %v469
        %v471 = vand.u32 2147483647, %v470
        %v473 = vcvt.s32.f32 %v466
        %v474 = vmul.f32 %v473, %v471
        %v475 = vxor.u32 %v474, 2147483648
        %v476 = vsel %vm393, %v475, %v474
        %v477 = vsub.s32 4, %v453
        %v478 = vsel %vm393, %v477, %v453
        %v479 = vsel %vm392, %v240, %v476
        %v480 = vsel %vm392, 0, %v478
        %v481 = vcosq.f32.pop %v479
        %v482 = vsinq.f32.pop %v479
        %vm483 = vweird.f32 %v240
        %v484 = vand.u32 %v480, 3
        %vm485 = vcmp.lt.s32.totalorder %v484, 2
        %vm486 = vcmp.eq.s32.totalorder %v484, 0
        %v487 = vxor.u32 %v482, 2147483648
        %v488 = vsel %vm486, %v481, %v487
        %vm489 = vcmp.eq.s32.totalorder %v484, 2
        %v490 = vxor.u32 %v481, 2147483648
        %v491 = vsel %vm489, %v490, %v482
        %v492 = vsel %vm485, %v488, %v491
        %v493 = vsel %vm483, nan, %v492
        %v494 = vsub.f32 0.0, %v240
        %v496 = vrot.slane %v390, 1
        %v498 = vmul.f32 %v494, %v496
        %v500 = vrot.slane %v493, 2
        %v502 = vmul.f32 %v498, %v500
        %v503 = vrot.slane %v493, 1
        %v505 = vmul.f32 %v240, %v503
        %v506 = vmul.f32 %v505, %v500
        %v507 = vrot.slane %v390, 2
        %v509 = vmul.f32 %v240, %v507
        %s510 = smul.u32 %s19, 128
        %s511 = sadd.s32 %s510, 3
        %s512 = sld [smem:[#allocation2 + %s511]]
        %s513 = sadd.s32 %s510, 4
        %s514 = sld [smem:[#allocation2 + %s513]]
        %s515 = sadd.s32 %s510, 5
        %s516 = sld [smem:[#allocation2 + %s515]]
        %s517 = sadd.s32 %s510, 6
        %s518 = sld [smem:[#allocation2 + %s517]]
        %s519 = sadd.s32 %s510, 7
        %s520 = sld [smem:[#allocation2 + %s519]]
        %s521 = sadd.s32 %s510, 8
        %s522 = sld [smem:[#allocation2 + %s521]]
        %v523 = vstv %s512
        %v524 = vsub.f32 %v502, %v523
        %v525 = vmul.f32 %v524, %v524
        %v526 = vstv %s514
        %v527 = vsub.f32 %v509, %v526
        %v528 = vmul.f32 %v527, %v527
        %v529 = vadd.f32 %v525, %v528
        %v530 = vstv %s516
        %v531 = vsub.f32 %v506, %v530
        %v532 = vmul.f32 %v531, %v531
        %v533 = vadd.f32 %v529, %v532
        %v534 = vrsqrt.pop %v533
        %v535 = vmul.f32 %v533, %v534
        %vm536 = vcmp.eq.f32.partialorder %v533, inf
        %v537 = vsel %vm536, %v533, %v535
        %vm538 = vcmp.eq.f32.partialorder %v533, 0.0
        %v539 = vand.u32 %v533, 2147483648
        %v540 = vsel %vm538, %v539, %v537
        %v541 = vstv %s518
        %v542 = vsub.f32 %v240, %v541
        %v543 = vmul.f32 %v542, %v542
        %v544 = vstv %s520
        %v545 = vsub.f32 %v240, %v544
        %v546 = vmul.f32 %v545, %v545
        %v548 = vrot.slane %v546, 1
        %v550 = vadd.f32 %v543, %v548
        %v551 = vstv %s522
        %v552 = vsub.f32 %v240, %v551
        %v553 = vmul.f32 %v552, %v552
        %v555 = vrot.slane %v553, 2
        %v557 = vadd.f32 %v550, %v555
        %v558 = vrsqrt.pop %v557
        %v559 = vmul.f32 %v557, %v558
        %vm560 = vcmp.eq.f32.partialorder %v557, inf
        %v561 = vsel %vm560, %v557, %v559
        %vm562 = vcmp.eq.f32.partialorder %v557, 0.0
        %v563 = vand.u32 %v557, 2147483648
        %v564 = vsel %vm562, %v563, %v561
        %v566 = vrot.slane %v564, 3
        %v568 = vadd.f32 %v540, %v566
        %s569 = sld [smem:[#allocation2 + %s510]]
        %v570 = vstv %s569
        %v571 = vsub.f32 %v286, %v570
        %v572 = vand.u32 2147483647, %v571
        %v574 = vrot.slane %v572, 1
        %v576 = vadd.f32 %v568, %v574
        %s577 = sadd.s32 %s510, 1
        %s578 = sld [smem:[#allocation2 + %s577]]
        %v579 = vstv %s578
        %v580 = vsub.f32 %v286, %v579
        %v581 = vand.u32 2147483647, %v580
        %v583 = vrot.slane %v581, 1
        %v585 = vadd.f32 %v568, %v583
        %s586 = sadd.s32 %s510, 2
        %s587 = sld [smem:[#allocation2 + %s586]]
        %v588 = vstv %s587
        %v589 = vsub.f32 %v286, %v588
        %v590 = vand.u32 2147483647, %v589
        %v592 = vrot.slane %v590, 1
        %v594 = vadd.f32 %v568, %v592
        %v596 = vrot.slane %v585, 7
        %v599 = vrot.slane %v594, 6
        %vm601 = vcmask 1040384
        %v602 = vsel %vm601, %v576, %v596
        %vm603 = vcmask 1041408
        %v604 = vsel %vm603, %v602, %v599
        %605 = vst [vmem:[%s238] sm:$0x7] %v604
        %p606 = scmp.lt.s32.totalorder %s19, 1
        %s607 = scalar_select %p606, %s19, 1
        %p608 = scmp.lt.s32.totalorder %s20, 0
        %s609 = scalar_select %p608, %s20, 0
        %s610 = sadd.s32 %s609, %s607
        %s611 = smul.addr %s610, 4
        %s612 = scalar_lea.vmem %s3, %s611
        // Predicated region
        $region37: #{hungarian_cost_matrix.1} parent=31 // pred_check
          %p613 = pneg %p124
        $region38: #{hungarian_cost_matrix.1} parent=31 // pred_check_branch
          %615 = sbr.rel (%p613) target = $region40
        $region39: #{hungarian_cost_matrix.1} parent=31 // pred_region
          _
        $region40: #{hungarian_cost_matrix.1} parent=31 // pred_fallthru
          _
      $region32: #{hungarian_cost_matrix.1} parent=5 // pred_fallthru
        _
      %p616 = scmp.le.s32.totalorder 2, %s10
      // Predicated region
      $region41: #{hungarian_cost_matrix.1} parent=5 // pred_check
        %p617 = pneg %p616
      $region42: #{hungarian_cost_matrix.1} parent=5 // pred_check_branch
        %619 = sbr.rel (%p617) target = $region44
      $region43: #{hungarian_cost_matrix.1} parent=5 // pred_region
        %s620 = ssub.s32 %s10, 2
        // Predicated region
        $region45: #{hungarian_cost_matrix.1} parent=43 // pred_check
          %p621 = pneg %p130
        $region46: #{hungarian_cost_matrix.1} parent=43 // pred_check_branch
          %623 = sbr.rel (%p621) target = $region48
        $region47: #{hungarian_cost_matrix.1} parent=43 // pred_region
          %p624 = scmp.lt.s32.totalorder %s21, 1
          %s625 = scalar_select %p624, %s21, 1
          %p626 = scmp.lt.s32.totalorder %s22, 0
          %s627 = scalar_select %p626, %s22, 0
          %s628 = sadd.s32 %s627, %s625
          %s629 = smul.addr %s628, 4
          %s630 = scalar_lea.vmem %s3, %s629
        $region48: #{hungarian_cost_matrix.1} parent=43 // pred_fallthru
          _
      $region44: #{hungarian_cost_matrix.1} parent=5 // pred_fallthru
        _
    $region6: #{hungarian_cost_matrix.1} parent=1 // loop_footer
      %s14 = sadd.s32 1, %s10
    $region7: #{hungarian_cost_matrix.1} parent=1 // loop_footer_branch
      %9 = sbr.rel target = $region3
    $region8: #{hungarian_cost_matrix.1} parent=1 // loop_exit
      _
    %631 = vsyncpa [#allocation3], 1
    %s632 = scalar_lea.sflag [#allocation3], 1
    %633 = vsyncpa %s632, 1

</llo_original>
